<compile_context>
chip_gen: v7x
topology: tpu7x:2x2x1
jax: 0.10.0
libtpu: 0.0.40
codegen_flags: <defaults>
</compile_context>

<pallas_src>
import functools

import jax
import jax.numpy as jnp
from jax.experimental import pallas as pl
from jax.experimental.pallas import tpu as pltpu

LANE = 128
_OUT_STORE_W = 8  # stored output width: >= 2 real columns, sublane friendly


def _round_up(n, m):
    return ((n + m - 1) // m) * m


def _cdiv(a, b):
    return -(-a // b)


def _elementwise_bf16_default():
    """bf16 VPU/EUP paths exist on v6e/v7x; not on v5e and older."""
    try:
        kind = jax.devices()[0].device_kind.lower()
    except Exception:
        return False
    return not any(t in kind for t in ("v2", "v3", "v4", "v5"))


def _mlp_kernel(num_layers, inp, act_dtype, *refs):
    """Whole forward pass per batch tile.

    refs layout:
      xk_ref  (tb, XW) f32   -- columns [x_0..x_{inp-1}, kMax, kMin, pad...]
      w1_ref, b1_ref,
      [w2_ref_i, b2_ref_i] * num_layers,
      w3_ref, b3_ref,
      o_ref   (tb, 8) f32
    """
    xk_ref = refs[0]
    w1_ref, b1_ref = refs[1], refs[2]
    hidden_refs = refs[3:3 + 2 * num_layers]
    w3_ref, b3_ref = refs[3 + 2 * num_layers], refs[4 + 2 * num_layers]
    o_ref = refs[-1]

    xk = xk_ref[...]  # (tb, XW) f32

    # fc1: K = inp is tiny (2 PDE coordinates) -> VPU broadcast multiply-adds;
    # skip an MXU push/drain round trip. Falls back to a matmul if inp is large.
    if inp <= 8:
        pre = b1_ref[...]  # (1, Hp), broadcasts up on first add
        for k in range(inp):
            pre = pre + xk[:, k:k + 1] * w1_ref[k:k + 1, :]
    else:
        # Extra xk columns (kMax/kMin/pad) multiply zero-padded w1 rows -> no-op.
        pre = jnp.dot(xk[:, :w1_ref.shape[0]], w1_ref[...],
                      preferred_element_type=jnp.float32) + b1_ref[...]
    h = jnp.tanh(pre.astype(act_dtype))  # (tb, Hp)

    # Hidden layers: MXU matmul with f32 accumulation; bias add in f32; tanh in
    # act_dtype (bf16 on v6e/v7x) so the next matmul input needs no extra cast.
    for i in range(num_layers):
        w_ref = hidden_refs[2 * i]
        b_ref = hidden_refs[2 * i + 1]
        z = jnp.dot(h.astype(w_ref.dtype), w_ref[...],
                    preferred_element_type=jnp.float32)
        h = jnp.tanh((z + b_ref[...]).astype(act_dtype))

    # fc3 + sigmoid; the denominator reciprocal lands on the (idle) EUP slot.
    z = jnp.dot(h.astype(w3_ref.dtype), w3_ref[...],
                preferred_element_type=jnp.float32)
    z = z + b3_ref[...]
    s = pl.reciprocal(1.0 + jnp.exp(-z), approx=True)  # (tb, OUTp) f32

    # EA_pred = (kMax - kMin) * s + kMin; only the first 8 columns are stored
    # (real output is 2-wide), wrapper slices back to (N, 2).
    kmax = xk[:, inp:inp + 1]
    kmin = xk[:, inp + 1:inp + 2]
    ea = (kmax - kmin) * s + kmin
    o_ref[...] = ea[:, :o_ref.shape[-1]].astype(o_ref.dtype)


def build_forward(params, *, tile_b=2048, use_bf16=True, elementwise_bf16=None):
    """Pad/cast parameters once and return a jitted forward(x) -> (N, 2).

    params: dict with
      'w1' (inp, H), 'b1' (H,), 'w2' list of (H, H), 'b2' list of (H,),
      'w3' (H, out), 'b3' (out,)  -- weights stored as (in_features, out_features).
    """
    inp, H = params["w1"].shape
    out_dim = params["w3"].shape[1]
    num_layers = len(params["w2"])
    assert inp >= 2 and out_dim >= 2

    Hp = _round_up(H, LANE)
    OUTp = _round_up(out_dim, LANE)
    ip = _round_up(inp, 8)               # padded fc1 rows
    XW = _round_up(inp + 2, 8)           # merged [x | kMax | kMin | pad] width

    if elementwise_bf16 is None:
        elementwise_bf16 = use_bf16 and _elementwise_bf16_default()
    act_dtype = jnp.bfloat16 if (use_bf16 and elementwise_bf16) else jnp.float32
    wdt = jnp.bfloat16 if use_bf16 else jnp.float32

    def pad2(a, r, c, dtype=jnp.float32):
        z = jnp.zeros((r, c), dtype)
        return z.at[:a.shape[0], :a.shape[1]].set(a.astype(dtype))

    # Zero padding keeps padded hidden units exactly 0 through tanh (tanh(0)=0),
    # so they contribute nothing downstream; padded output columns are discarded.
    w1 = pad2(params["w1"], ip, Hp)                       # f32 (VPU fc1 path)
    b1 = pad2(params["b1"].reshape(1, -1), 1, Hp)
    weight_ops = [w1, b1]
    for wl, bl in zip(params["w2"], params["b2"]):
        weight_ops += [pad2(wl, Hp, Hp, wdt), pad2(bl.reshape(1, -1), 1, Hp)]
    weight_ops += [pad2(params["w3"], Hp, OUTp, wdt),
                   pad2(params["b3"].reshape(1, -1), 1, OUTp)]

    kernel = functools.partial(_mlp_kernel, num_layers, inp, act_dtype)

    @jax.jit
    def forward(x):
        N = x.shape[0]
        # Big batch tiles amortize the ~0.35 us/grid-step pipeline overhead;
        # always >= 2 grid steps so both v7x TensorCores get work.
        num_steps = max(2, _cdiv(N, tile_b))
        tb = _round_up(_cdiv(N, num_steps), 8)
        Np = tb * num_steps

        x32 = x.astype(jnp.float32)
        x0, x1 = x32[:, 0:1], x32[:, 1:2]
        kmax = 100.0 * (0.01 * jnp.sin(3.0 * x0) * jnp.cos(x1) ** 2 + 0.03)
        kmin = 100.0 * (0.005 * jnp.sin(3.0 * x0) * jnp.cos(x1))
        feats = jnp.concatenate([x32[:, :inp], kmax, kmin], axis=1)  # (N, inp+2)
        xk = jnp.zeros((Np, XW), jnp.float32).at[:N, :inp + 2].set(feats)

        # One batch-tiled input; weights/biases are grid-invariant (constant
        # index_map) so Pallas keeps them resident (no re-DMA across steps).
        in_specs = [pl.BlockSpec((tb, XW), lambda i: (i, 0))]
        for w in weight_ops:
            in_specs.append(pl.BlockSpec(w.shape, lambda i: (0, 0)))
        out_spec = pl.BlockSpec((tb, _OUT_STORE_W), lambda i: (i, 0))

        y_pad = pl.pallas_call(
            kernel,
            out_shape=jax.ShapeDtypeStruct((Np, _OUT_STORE_W), jnp.float32),
            grid_spec=pltpu.PrefetchScalarGridSpec(
                num_scalar_prefetch=0,
                grid=(num_steps,),
                in_specs=in_specs,
                out_specs=out_spec,
            ),
            compiler_params=pltpu.CompilerParams(
                dimension_semantics=("parallel",),
            ),
        )(xk, *weight_ops)

        return y_pad[:N, :2]

    return forward


def multilayer_net_e_forward(x, params, **kwargs):
    """One-shot convenience wrapper (re-pads params per call; prefer build_forward)."""
    return build_forward(params, **kwargs)(x)


def init_params(key, inp, out, hidden, num_layers):
    """PyTorch-Linear-style init (uniform +/- 1/sqrt(fan_in)), weights stored
    pre-transposed as (in_features, out_features)."""
    keys = jax.random.split(key, 2 * (num_layers + 2))
    ki = iter(keys)

    def linear(kw, kb, fan_in, fan_out):
        bound = 1.0 / jnp.sqrt(jnp.float32(fan_in))
        w = jax.random.uniform(kw, (fan_in, fan_out), jnp.float32, -bound, bound)
        b = jax.random.uniform(kb, (fan_out,), jnp.float32, -bound, bound)
        return w, b

    w1, b1 = linear(next(ki), next(ki), inp, hidden)
    w2s, b2s = [], []
    for _ in range(num_layers):
        w, b = linear(next(ki), next(ki), hidden, hidden)
        w2s.append(w)
        b2s.append(b)
    w3, b3 = linear(next(ki), next(ki), hidden, out)
    return {"w1": w1, "b1": b1, "w2": w2s, "b2": b2s, "w3": w3, "b3": b3}


def reference_forward(x, params):
    """Pure-JAX f32 reference matching the PyTorch MultiLayerNetE forward."""
    h = jnp.tanh(x @ params["w1"] + params["b1"])
    for wl, bl in zip(params["w2"], params["b2"]):
        h = jnp.tanh(h @ wl + bl)
    z = h @ params["w3"] + params["b3"]
    s = jax.nn.sigmoid(z)
    x0, x1 = x[:, 0:1], x[:, 1:2]
    kmax = 100.0 * (0.01 * jnp.sin(3.0 * x0) * jnp.cos(x1) ** 2 + 0.03)
    kmin = 100.0 * (0.005 * jnp.sin(3.0 * x0) * jnp.cos(x1))
    return (kmax - kmin) * s[:, 0:2] + kmin


if __name__ == "__main__":
    # Small shapes consistent with the module: collocation points with 2 input
    # coordinates, 2 outputs (forward slices the first two), tanh activation.
    N = 64            # number of collocation points (batch)
    INP = 2           # input dim (x, y coordinates)
    OUT = 2           # output dim (>= 2; EA_pred uses the first two)
    HIDDEN = 32       # num_hidden_units
    NUM_LAYERS = 1    # num_layers

    key = jax.random.PRNGKey(0)
    kx, kp = jax.random.split(key)
    x = jax.random.normal(kx, (N, INP), dtype=jnp.float32)
    params = init_params(kp, INP, OUT, HIDDEN, NUM_LAYERS)

    y_ref = reference_forward(x, params)

    # f32 weight/elementwise path (what v5e uses): only the approx EUP
    # reciprocal differs from the reference.
    fwd_f32 = build_forward(params, tile_b=2048, use_bf16=False)
    y32 = jax.block_until_ready(fwd_f32(x))
    assert y32.shape == (N, 2), y32.shape
    assert jnp.allclose(y32, y_ref, atol=2e-2, rtol=2e-2), "f32 mismatch vs reference"

    # bf16 weights (+ bf16 elementwise on v6e/v7x): loosened tolerance.
    fwd_bf16 = build_forward(params, tile_b=2048, use_bf16=True)
    y16 = jax.block_until_ready(fwd_bf16(x))
    assert y16.shape == (N, 2), y16.shape
    assert jnp.allclose(y16, y_ref, atol=5e-2, rtol=5e-2), "bf16 mismatch vs reference"

    print("KERNEL_OK")
</pallas_src>

<mosaic_0001>
module attributes {stable_mosaic.version = 11 : i64} {
  func.func @_mlp_kernel(%arg0: i32, %arg1: memref<32x8xf32, #tpu.memory_space<vmem>>, %arg2: memref<8x128xf32, #tpu.memory_space<vmem>>, %arg3: memref<1x128xf32, #tpu.memory_space<vmem>>, %arg4: memref<128x128xf32, #tpu.memory_space<vmem>>, %arg5: memref<1x128xf32, #tpu.memory_space<vmem>>, %arg6: memref<128x128xf32, #tpu.memory_space<vmem>>, %arg7: memref<1x128xf32, #tpu.memory_space<vmem>>, %arg8: memref<32x8xf32, #tpu.memory_space<vmem>>) attributes {dimension_semantics = [#tpu.dimension_semantics<parallel>], iteration_bounds = array<i64: 2>, scalar_prefetch = 0 : i64, scratch_operands = 0 : i64, tpu.core_type = #tpu.core_type<tc>, window_params = [{transform_indices = @transform_0, window_bounds = array<i64: 32, 8>}, {pipeline_mode = #tpu.pipeline_mode<synchronous>, transform_indices = @transform_1, window_bounds = array<i64: 8, 128>}, {pipeline_mode = #tpu.pipeline_mode<synchronous>, transform_indices = @transform_2, window_bounds = array<i64: 1, 128>}, {pipeline_mode = #tpu.pipeline_mode<synchronous>, transform_indices = @transform_3, window_bounds = array<i64: 128, 128>}, {pipeline_mode = #tpu.pipeline_mode<synchronous>, transform_indices = @transform_4, window_bounds = array<i64: 1, 128>}, {pipeline_mode = #tpu.pipeline_mode<synchronous>, transform_indices = @transform_5, window_bounds = array<i64: 128, 128>}, {pipeline_mode = #tpu.pipeline_mode<synchronous>, transform_indices = @transform_6, window_bounds = array<i64: 1, 128>}, {transform_indices = @transform_7, window_bounds = array<i64: 32, 8>}]} {
    %c0 = arith.constant 0 : index
    %c0_0 = arith.constant 0 : index
    %0 = vector.load %arg1[%c0, %c0_0] : memref<32x8xf32, #tpu.memory_space<vmem>>, vector<32x8xf32>
    %c0_1 = arith.constant 0 : index
    %c0_2 = arith.constant 0 : index
    %1 = vector.load %arg3[%c0_1, %c0_2] : memref<1x128xf32, #tpu.memory_space<vmem>>, vector<1x128xf32>
    %2 = vector.extract_strided_slice %0 {offsets = [0, 0], sizes = [32, 1], strides = [1, 1]} : vector<32x8xf32> to vector<32x1xf32>
    %c0_3 = arith.constant 0 : index
    %c0_4 = arith.constant 0 : index
    %3 = vector.load %arg2[%c0_3, %c0_4] : memref<8x128xf32, #tpu.memory_space<vmem>>, vector<1x128xf32>
    %4 = vector.broadcast %2 : vector<32x1xf32> to vector<32x128xf32>
    %5 = vector.broadcast %3 : vector<1x128xf32> to vector<32x128xf32>
    %6 = arith.mulf %4, %5 : vector<32x128xf32>
    %7 = vector.broadcast %1 : vector<1x128xf32> to vector<32x128xf32>
    %8 = arith.addf %7, %6 : vector<32x128xf32>
    %9 = vector.extract_strided_slice %0 {offsets = [0, 1], sizes = [32, 1], strides = [1, 1]} : vector<32x8xf32> to vector<32x1xf32>
    %c1 = arith.constant 1 : index
    %c0_5 = arith.constant 0 : index
    %10 = vector.load %arg2[%c1, %c0_5] : memref<8x128xf32, #tpu.memory_space<vmem>>, vector<1x128xf32>
    %11 = vector.broadcast %9 : vector<32x1xf32> to vector<32x128xf32>
    %12 = vector.broadcast %10 : vector<1x128xf32> to vector<32x128xf32>
    %13 = arith.mulf %11, %12 : vector<32x128xf32>
    %14 = arith.addf %8, %13 : vector<32x128xf32>
    %15 = math.tanh %14 : vector<32x128xf32>
    %c0_6 = arith.constant 0 : index
    %c0_7 = arith.constant 0 : index
    %16 = vector.load %arg4[%c0_6, %c0_7] : memref<128x128xf32, #tpu.memory_space<vmem>>, vector<128x128xf32>
    %cst = arith.constant dense<0.000000e+00> : vector<32x128xf32>
    %17 = tpu.matmul %15, %16, %cst {dimension_numbers = #tpu.dot_dimension_numbers<[1], [0], [0], [1], [0, 0, 1, 1], [], []>} : vector<32x128xf32>, vector<128x128xf32>, vector<32x128xf32> -> vector<32x128xf32>
    %c0_8 = arith.constant 0 : index
    %c0_9 = arith.constant 0 : index
    %18 = vector.load %arg5[%c0_8, %c0_9] : memref<1x128xf32, #tpu.memory_space<vmem>>, vector<1x128xf32>
    %19 = vector.broadcast %18 : vector<1x128xf32> to vector<32x128xf32>
    %20 = arith.addf %17, %19 : vector<32x128xf32>
    %21 = math.tanh %20 : vector<32x128xf32>
    %c0_10 = arith.constant 0 : index
    %c0_11 = arith.constant 0 : index
    %22 = vector.load %arg6[%c0_10, %c0_11] : memref<128x128xf32, #tpu.memory_space<vmem>>, vector<128x128xf32>
    %cst_12 = arith.constant dense<0.000000e+00> : vector<32x128xf32>
    %23 = tpu.matmul %21, %22, %cst_12 {dimension_numbers = #tpu.dot_dimension_numbers<[1], [0], [0], [1], [0, 0, 1, 1], [], []>} : vector<32x128xf32>, vector<128x128xf32>, vector<32x128xf32> -> vector<32x128xf32>
    %c0_13 = arith.constant 0 : index
    %c0_14 = arith.constant 0 : index
    %24 = vector.load %arg7[%c0_13, %c0_14] : memref<1x128xf32, #tpu.memory_space<vmem>>, vector<1x128xf32>
    %25 = vector.broadcast %24 : vector<1x128xf32> to vector<32x128xf32>
    %26 = arith.addf %23, %25 : vector<32x128xf32>
    %cst_15 = arith.constant 0.000000e+00 : f32
    %27 = vector.broadcast %cst_15 : f32 to vector<32x128xf32>
    %28 = arith.subf %27, %26 : vector<32x128xf32>
    %29 = math.exp %28 : vector<32x128xf32>
    %cst_16 = arith.constant 1.000000e+00 : f32
    %30 = vector.broadcast %cst_16 : f32 to vector<32x128xf32>
    %31 = arith.addf %30, %29 : vector<32x128xf32>
    %32 = tpu.reciprocal %31 {approx = true} : vector<32x128xf32> -> vector<32x128xf32>
    %33 = vector.extract_strided_slice %0 {offsets = [0, 2], sizes = [32, 1], strides = [1, 1]} : vector<32x8xf32> to vector<32x1xf32>
    %34 = vector.extract_strided_slice %0 {offsets = [0, 3], sizes = [32, 1], strides = [1, 1]} : vector<32x8xf32> to vector<32x1xf32>
    %35 = arith.subf %33, %34 : vector<32x1xf32>
    %36 = vector.broadcast %35 : vector<32x1xf32> to vector<32x128xf32>
    %37 = arith.mulf %36, %32 : vector<32x128xf32>
    %38 = vector.broadcast %34 : vector<32x1xf32> to vector<32x128xf32>
    %39 = arith.addf %37, %38 : vector<32x128xf32>
    %40 = vector.extract_strided_slice %39 {offsets = [0, 0], sizes = [32, 8], strides = [1, 1]} : vector<32x128xf32> to vector<32x8xf32>
    %c0_17 = arith.constant 0 : index
    %c0_18 = arith.constant 0 : index
    %41 = vector.load %arg8[%c0_17, %c0_18] : memref<32x8xf32, #tpu.memory_space<vmem>>, vector<32x8xf32>
    tpu.vector_store %arg8[%c0_17, %c0_18], %40 {strides = array<i32>} : memref<32x8xf32, #tpu.memory_space<vmem>>, vector<32x8xf32>,
    return
  }
  func.func @transform_0(%arg0: i32) -> (i32, i32) {
    %c0_i32 = arith.constant 0 : i32
    %c0_i32_0 = arith.constant 0 : i32
    return %arg0, %c0_i32 : i32, i32
  }
  func.func @transform_1(%arg0: i32) -> (i32, i32) {
    %c0_i32 = arith.constant 0 : i32
    %c0_i32_0 = arith.constant 0 : i32
    %c0_i32_1 = arith.constant 0 : i32
    return %c0_i32, %c0_i32_0 : i32, i32
  }
  func.func @transform_2(%arg0: i32) -> (i32, i32) {
    %c0_i32 = arith.constant 0 : i32
    %c0_i32_0 = arith.constant 0 : i32
    %c0_i32_1 = arith.constant 0 : i32
    return %c0_i32, %c0_i32_0 : i32, i32
  }
  func.func @transform_3(%arg0: i32) -> (i32, i32) {
    %c0_i32 = arith.constant 0 : i32
    %c0_i32_0 = arith.constant 0 : i32
    %c0_i32_1 = arith.constant 0 : i32
    return %c0_i32, %c0_i32_0 : i32, i32
  }
  func.func @transform_4(%arg0: i32) -> (i32, i32) {
    %c0_i32 = arith.constant 0 : i32
    %c0_i32_0 = arith.constant 0 : i32
    %c0_i32_1 = arith.constant 0 : i32
    return %c0_i32, %c0_i32_0 : i32, i32
  }
  func.func @transform_5(%arg0: i32) -> (i32, i32) {
    %c0_i32 = arith.constant 0 : i32
    %c0_i32_0 = arith.constant 0 : i32
    %c0_i32_1 = arith.constant 0 : i32
    return %c0_i32, %c0_i32_0 : i32, i32
  }
  func.func @transform_6(%arg0: i32) -> (i32, i32) {
    %c0_i32 = arith.constant 0 : i32
    %c0_i32_0 = arith.constant 0 : i32
    %c0_i32_1 = arith.constant 0 : i32
    return %c0_i32, %c0_i32_0 : i32, i32
  }
  func.func @transform_7(%arg0: i32) -> (i32, i32) {
    %c0_i32 = arith.constant 0 : i32
    %c0_i32_0 = arith.constant 0 : i32
    return %arg0, %c0_i32 : i32, i32
  }
}

</mosaic_0001>

<llo_original>
// kernel: forward.1
$region0: #{forward.1}
  #allocation0 [shape = 'u32[]', space=smem, size = 0x4, offset = 0x4, fixed_abs, tag = 'smem constant byte address 0x4 - core index']
  #allocation1 [shape = 'u32[144,128]{1,0:T(1,128)}', space=vmem, size = 0x12000, scoped, tag = 'internal scratch']
  %s0 = inlined_call_operand.vmem [shape: f32[64,8], index: 0, kind: input, shape index: {}]
  %s1 = inlined_call_operand.vmem [shape: f32[8,128], index: 1, kind: input, shape index: {}]
  %s2 = inlined_call_operand.vmem [shape: f32[1,128], index: 2, kind: input, shape index: {}]
  %s3 = inlined_call_operand.vmem [shape: f32[128,128], index: 3, kind: input, shape index: {}]
  %s4 = inlined_call_operand.vmem [shape: f32[1,128], index: 4, kind: input, shape index: {}]
  %s5 = inlined_call_operand.vmem [shape: f32[128,128], index: 5, kind: input, shape index: {}]
  %s6 = inlined_call_operand.vmem [shape: f32[1,128], index: 6, kind: input, shape index: {}]
  %s7 = inlined_call_operand.vmem [shape: f32[64,8], index: 7, kind: output, shape index: {}]
  %s8 = sld [smem:[#allocation0]]
  $region61: #{forward.1} parent=0
    _
  %s10 = ssub.s32 1, %s8
  %s11 = scalar_select 0, %s10, %s8
  loop: start=0, step=1, limit=4
  $region2: #{forward.1} parent=0 // loop_pre_header
    _
  $region3: #{forward.1} parent=0 // loop_header
    %s13 = sphi 0, %s17
    %p14 = scmp.ge.s32.totalorder %s13, 4
    %s23 = sphi 0, %s25
    %s26 = sphi 0, %s23
    %s27 = sphi 0, %s26
    %s43 = sphi 0, %s27
    %s47 = sphi 0, %s47
    %s49 = sphi 0, %s47
    %s50 = sphi 0, %s49
    %s64 = sphi 0, %s50
    %s68 = sphi 0, %s68
    %s70 = sphi 0, %s68
    %s71 = sphi 0, %s70
    %s85 = sphi 0, %s71
    %s89 = sphi 0, %s89
    %s91 = sphi 0, %s89
    %s92 = sphi 0, %s91
    %s106 = sphi 0, %s92
    %s110 = sphi 0, %s110
    %s112 = sphi 0, %s110
    %s113 = sphi 0, %s112
    %s127 = sphi 0, %s113
    %s131 = sphi 0, %s131
    %s133 = sphi 0, %s131
    %s134 = sphi 0, %s133
    %s148 = sphi 0, %s134
    %s152 = sphi 0, %s152
    %s154 = sphi 0, %s152
    %s155 = sphi 0, %s154
    %s169 = sphi 0, %s155
    %s175 = sphi 0, %s177
    %s178 = sphi 0, %s175
    %s179 = sphi 0, %s178
    %s195 = sphi 0, %s179
  $region4: #{forward.1} parent=0 // loop_header_branch
    %16 = sbr.rel (%p14) target = $region8
  $region5: #{forward.1} parent=0 // loop_body
    %s18 = ssub.s32 %s13, 1
    %s19 = ssub.s32 %s13, 2
    %s20 = sadd.s32 %s13, 1
    %s21 = ssub.s32 %s13, %s20
    %p22 = scmp.eq.s32.totalorder %s21, 0
    %s24 = sadd.s32 %s23, 1
    %s25 = scalar_select %p22, %s23, %s24
    %p28 = pneg %p22
    %p29 = scmp.eq.s32.totalorder %s13, 1
    %p30 = por %p28, %p29
    %p31 = scmp.ne.s32.totalorder %s23, %s26
    %p32 = scmp.eq.s32.totalorder %s13, 0
    %p33 = por %p31, %p32
    %p34 = scmp.ne.s32.totalorder %s23, %s26
    %p35 = scmp.eq.s32.totalorder %s18, 1
    %p36 = por %p34, %p35
    %p37 = scmp.ne.s32.totalorder %s26, %s27
    %p38 = scmp.eq.s32.totalorder %s18, 0
    %p39 = por %p37, %p38
    %p40 = scmp.ne.s32.totalorder %s26, %s27
    %p41 = scmp.eq.s32.totalorder %s19, 1
    %p42 = por %p40, %p41
    %p44 = scmp.ne.s32.totalorder %s27, %s43
    %p45 = scmp.eq.s32.totalorder %s19, 0
    %p46 = por %p44, %p45
    %s48 = sadd.s32 %s47, 1
    %p51 = scmp.eq.s32.totalorder %s13, 1
    %p52 = scmp.ne.s32.totalorder %s47, %s49
    %p53 = scmp.eq.s32.totalorder %s13, 0
    %p54 = por %p52, %p53
    %p55 = scmp.ne.s32.totalorder %s47, %s49
    %p56 = scmp.eq.s32.totalorder %s18, 1
    %p57 = por %p55, %p56
    %p58 = scmp.ne.s32.totalorder %s49, %s50
    %p59 = scmp.eq.s32.totalorder %s18, 0
    %p60 = por %p58, %p59
    %p61 = scmp.ne.s32.totalorder %s49, %s50
    %p62 = scmp.eq.s32.totalorder %s19, 1
    %p63 = por %p61, %p62
    %p65 = scmp.ne.s32.totalorder %s50, %s64
    %p66 = scmp.eq.s32.totalorder %s19, 0
    %p67 = por %p65, %p66
    %s69 = sadd.s32 %s68, 1
    %p72 = scmp.eq.s32.totalorder %s13, 1
    %p73 = scmp.ne.s32.totalorder %s68, %s70
    %p74 = scmp.eq.s32.totalorder %s13, 0
    %p75 = por %p73, %p74
    %p76 = scmp.ne.s32.totalorder %s68, %s70
    %p77 = scmp.eq.s32.totalorder %s18, 1
    %p78 = por %p76, %p77
    %p79 = scmp.ne.s32.totalorder %s70, %s71
    %p80 = scmp.eq.s32.totalorder %s18, 0
    %p81 = por %p79, %p80
    %p82 = scmp.ne.s32.totalorder %s70, %s71
    %p83 = scmp.eq.s32.totalorder %s19, 1
    %p84 = por %p82, %p83
    %p86 = scmp.ne.s32.totalorder %s71, %s85
    %p87 = scmp.eq.s32.totalorder %s19, 0
    %p88 = por %p86, %p87
    %s90 = sadd.s32 %s89, 1
    %p93 = scmp.eq.s32.totalorder %s13, 1
    %p94 = scmp.ne.s32.totalorder %s89, %s91
    %p95 = scmp.eq.s32.totalorder %s13, 0
    %p96 = por %p94, %p95
    %p97 = scmp.ne.s32.totalorder %s89, %s91
    %p98 = scmp.eq.s32.totalorder %s18, 1
    %p99 = por %p97, %p98
    %p100 = scmp.ne.s32.totalorder %s91, %s92
    %p101 = scmp.eq.s32.totalorder %s18, 0
    %p102 = por %p100, %p101
    %p103 = scmp.ne.s32.totalorder %s91, %s92
    %p104 = scmp.eq.s32.totalorder %s19, 1
    %p105 = por %p103, %p104
    %p107 = scmp.ne.s32.totalorder %s92, %s106
    %p108 = scmp.eq.s32.totalorder %s19, 0
    %p109 = por %p107, %p108
    %s111 = sadd.s32 %s110, 1
    %p114 = scmp.eq.s32.totalorder %s13, 1
    %p115 = scmp.ne.s32.totalorder %s110, %s112
    %p116 = scmp.eq.s32.totalorder %s13, 0
    %p117 = por %p115, %p116
    %p118 = scmp.ne.s32.totalorder %s110, %s112
    %p119 = scmp.eq.s32.totalorder %s18, 1
    %p120 = por %p118, %p119
    %p121 = scmp.ne.s32.totalorder %s112, %s113
    %p122 = scmp.eq.s32.totalorder %s18, 0
    %p123 = por %p121, %p122
    %p124 = scmp.ne.s32.totalorder %s112, %s113
    %p125 = scmp.eq.s32.totalorder %s19, 1
    %p126 = por %p124, %p125
    %p128 = scmp.ne.s32.totalorder %s113, %s127
    %p129 = scmp.eq.s32.totalorder %s19, 0
    %p130 = por %p128, %p129
    %s132 = sadd.s32 %s131, 1
    %p135 = scmp.eq.s32.totalorder %s13, 1
    %p136 = scmp.ne.s32.totalorder %s131, %s133
    %p137 = scmp.eq.s32.totalorder %s13, 0
    %p138 = por %p136, %p137
    %p139 = scmp.ne.s32.totalorder %s131, %s133
    %p140 = scmp.eq.s32.totalorder %s18, 1
    %p141 = por %p139, %p140
    %p142 = scmp.ne.s32.totalorder %s133, %s134
    %p143 = scmp.eq.s32.totalorder %s18, 0
    %p144 = por %p142, %p143
    %p145 = scmp.ne.s32.totalorder %s133, %s134
    %p146 = scmp.eq.s32.totalorder %s19, 1
    %p147 = por %p145, %p146
    %p149 = scmp.ne.s32.totalorder %s134, %s148
    %p150 = scmp.eq.s32.totalorder %s19, 0
    %p151 = por %p149, %p150
    %s153 = sadd.s32 %s152, 1
    %p156 = scmp.eq.s32.totalorder %s13, 1
    %p157 = scmp.ne.s32.totalorder %s152, %s154
    %p158 = scmp.eq.s32.totalorder %s13, 0
    %p159 = por %p157, %p158
    %p160 = scmp.ne.s32.totalorder %s152, %s154
    %p161 = scmp.eq.s32.totalorder %s18, 1
    %p162 = por %p160, %p161
    %p163 = scmp.ne.s32.totalorder %s154, %s155
    %p164 = scmp.eq.s32.totalorder %s18, 0
    %p165 = por %p163, %p164
    %p166 = scmp.ne.s32.totalorder %s154, %s155
    %p167 = scmp.eq.s32.totalorder %s19, 1
    %p168 = por %p166, %p167
    %p170 = scmp.ne.s32.totalorder %s155, %s169
    %p171 = scmp.eq.s32.totalorder %s19, 0
    %p172 = por %p170, %p171
    %s173 = ssub.s32 %s13, %s20
    %p174 = scmp.eq.s32.totalorder %s173, 0
    %s176 = sadd.s32 %s175, 1
    %s177 = scalar_select %p174, %s175, %s176
    %p180 = pneg %p174
    %p181 = scmp.eq.s32.totalorder %s13, 1
    %p182 = por %p180, %p181
    %p183 = scmp.ne.s32.totalorder %s175, %s178
    %p184 = scmp.eq.s32.totalorder %s13, 0
    %p185 = por %p183, %p184
    %p186 = scmp.ne.s32.totalorder %s175, %s178
    %p187 = scmp.eq.s32.totalorder %s18, 1
    %p188 = por %p186, %p187
    %p189 = scmp.ne.s32.totalorder %s178, %s179
    %p190 = scmp.eq.s32.totalorder %s18, 0
    %p191 = por %p189, %p190
    %p192 = scmp.ne.s32.totalorder %s178, %s179
    %p193 = scmp.eq.s32.totalorder %s19, 1
    %p194 = por %p192, %p193
    %p196 = scmp.ne.s32.totalorder %s179, %s195
    %p197 = scmp.eq.s32.totalorder %s19, 0
    %p198 = por %p196, %p197
    %p199 = scmp.le.s32.totalorder 1, %s13
    %p200 = scmp.lt.s32.totalorder %s13, 3
    %p201 = pnand %p199, %p200
    %p202 = pneg %p201
    // Predicated region
    $region9: #{forward.1} parent=5 // pred_check
      _
    $region10: #{forward.1} parent=5 // pred_check_branch
      %204 = sbr.rel (%p201) target = $region12
    $region11: #{forward.1} parent=5 // pred_region
      %s205 = ssub.s32 %s13, 1
      // Predicated region
      $region13: #{forward.1} parent=11 // pred_check
        %p206 = pneg %p60
      $region14: #{forward.1} parent=11 // pred_check_branch
        %208 = sbr.rel (%p206) target = $region16
      $region15: #{forward.1} parent=11 // pred_region
        _
      $region16: #{forward.1} parent=11 // pred_fallthru
        _
      // Predicated region
      $region17: #{forward.1} parent=11 // pred_check
        %p209 = pneg %p81
      $region18: #{forward.1} parent=11 // pred_check_branch
        %211 = sbr.rel (%p209) target = $region20
      $region19: #{forward.1} parent=11 // pred_region
        _
      $region20: #{forward.1} parent=11 // pred_fallthru
        _
      // Predicated region
      $region21: #{forward.1} parent=11 // pred_check
        %p212 = pneg %p102
      $region22: #{forward.1} parent=11 // pred_check_branch
        %214 = sbr.rel (%p212) target = $region24
      $region23: #{forward.1} parent=11 // pred_region
        _
      $region24: #{forward.1} parent=11 // pred_fallthru
        _
      // Predicated region
      $region25: #{forward.1} parent=11 // pred_check
        %p215 = pneg %p123
      $region26: #{forward.1} parent=11 // pred_check_branch
        %217 = sbr.rel (%p215) target = $region28
      $region27: #{forward.1} parent=11 // pred_region
        _
      $region28: #{forward.1} parent=11 // pred_fallthru
        _
      // Predicated region
      $region29: #{forward.1} parent=11 // pred_check
        %p218 = pneg %p144
      $region30: #{forward.1} parent=11 // pred_check_branch
        %220 = sbr.rel (%p218) target = $region32
      $region31: #{forward.1} parent=11 // pred_region
        _
      $region32: #{forward.1} parent=11 // pred_fallthru
        _
      // Predicated region
      $region33: #{forward.1} parent=11 // pred_check
        %p221 = pneg %p165
      $region34: #{forward.1} parent=11 // pred_check_branch
        %223 = sbr.rel (%p221) target = $region36
      $region35: #{forward.1} parent=11 // pred_region
        _
      $region36: #{forward.1} parent=11 // pred_fallthru
        _
    $region12: #{forward.1} parent=5 // pred_fallthru
      _
    %p224 = scmp.lt.s32.totalorder %s13, 2
    // Predicated region
    $region37: #{forward.1} parent=5 // pred_check
      %p225 = pneg %p224
    $region38: #{forward.1} parent=5 // pred_check_branch
      %227 = sbr.rel (%p225) target = $region40
    $region39: #{forward.1} parent=5 // pred_region
      // Predicated region
      $region41: #{forward.1} parent=39 // pred_check
        %p228 = pneg %p33
      $region42: #{forward.1} parent=39 // pred_check_branch
        %230 = sbr.rel (%p228) target = $region44
      $region43: #{forward.1} parent=39 // pred_region
        %s231 = smul.u32 4, %s13
        %p232 = scmp.lt.s32.totalorder %s231, 7
        %s233 = scalar_select %p232, %s231, 7
        %s234 = smul.addr %s233, 8
        %s235 = scalar_lea.vmem %s0, %s234
        %s236 = smul.u32 4, %s13
      $region44: #{forward.1} parent=39 // pred_fallthru
        _
    $region40: #{forward.1} parent=5 // pred_fallthru
      _
    %p237 = scmp.le.s32.totalorder 1, %s13
    %p238 = scmp.lt.s32.totalorder %s13, 3
    %p239 = pnand %p237, %p238
    %p240 = pneg %p239
    // Predicated region
    $region45: #{forward.1} parent=5 // pred_check
      _
    $region46: #{forward.1} parent=5 // pred_check_branch
      %242 = sbr.rel (%p239) target = $region48
    $region47: #{forward.1} parent=5 // pred_region
      %s243 = ssub.s32 %s13, 1
      %s244 = smul.u32 4, %s18
      %p245 = scmp.lt.s32.totalorder %s244, 7
      %s246 = scalar_select %p245, %s244, 7
      %s247 = smul.addr %s246, 8
      %s248 = scalar_lea.vmem %s0, %s247
      %p249 = pneg %p39
      %p250 = pneg %p36
      %p251 = pneg %p60
      %p252 = pneg %p57
      %p253 = pneg %p81
      %p254 = pneg %p78
      %p255 = pneg %p102
      %p256 = pneg %p99
      %p257 = pneg %p123
      %p258 = pneg %p120
      %p259 = pneg %p144
      %p260 = pneg %p141
      %p261 = pneg %p165
      %p262 = pneg %p162
      %p263 = pneg %p191
      %p264 = pneg %p188
      %s265 = smul.u32 4, %s18
      %p266 = scmp.lt.s32.totalorder %s265, 7
      %s267 = scalar_select %p266, %s265, 7
      %s268 = smul.addr %s267, 8
      %s269 = scalar_lea.vmem %s7, %s268
      %s270 = smul.u32 4, %s18
      %p271 = scmp.lt.s32.totalorder %s270, 7
      %s272 = scalar_select %p271, %s270, 7
      %s273 = smul.addr %s272, 8
      %s274 = scalar_lea.vmem %s0, %s273
      %s275 = smul.u32 4, %s18
      %s276 = smul.u32 4, %s18
      %p277 = scmp.lt.s32.totalorder %s276, 7
      %s278 = scalar_select %p277, %s276, 7
      %s279 = smul.addr %s278, 8
      %s280 = scalar_lea.vmem %s7, %s279
      %s281 = smul.u32 4, %s18
      %v282 = vld [vmem:[%s274] sm:$0xff]
      %v283 = vld [vmem:[%s274 + $0x8] sm:$0xff]
      %v284 = vld [vmem:[%s274 + $0x10] sm:$0xff]
      %v285 = vld [vmem:[%s274 + $0x18] sm:$0xff]
      %v286 = vld [vmem:[%s2] sm:$0x1]
      %v287 = vld [vmem:[%s1] sm:$0x1]
      %289 = vset.pattern.permute.xlu0 0
      %290 = vperm.xlu0 %289, %v282
      %v291 = vpop.permute.xlu0 %290
      %294 = vset.pattern.permute.xlu0 0
      %295 = vperm.xlu0 %294, %v283
      %v296 = vpop.permute.xlu0 %295
      %299 = vset.pattern.permute.xlu0 0
      %300 = vperm.xlu0 %299, %v284
      %v301 = vpop.permute.xlu0 %300
      %304 = vset.pattern.permute.xlu0 0
      %305 = vperm.xlu0 %304, %v285
      %v306 = vpop.permute.xlu0 %305
      %v308 = vlaneseq
      %v309 = vshrl.u32 %v308, 7
      %v310 = vsub.s32 0, %v309
      %v311 = vrot.slane %v287, %v310
      %v312 = vmul.f32 %v291, %v311
      %v313 = vmul.f32 %v296, %v311
      %v314 = vmul.f32 %v301, %v311
      %v315 = vmul.f32 %v306, %v311
      %v317 = vlaneseq
      %v318 = vshrl.u32 %v317, 7
      %v319 = vsub.s32 0, %v318
      %v320 = vrot.slane %v286, %v319
      %v322 = vadd.f32 %v320, %v312
      %v323 = vadd.f32 %v320, %v313
      %v324 = vadd.f32 %v320, %v314
      %v325 = vadd.f32 %v320, %v315
      %v326 = vld [vmem:[%s1 + $0x1] sm:$0x1]
      %327 = vset.pattern.permute.xlu0 1
      %328 = vperm.xlu0 %327, %v282
      %v329 = vpop.permute.xlu0 %328
      %331 = vset.pattern.permute.xlu0 1
      %332 = vperm.xlu0 %331, %v283
      %v333 = vpop.permute.xlu0 %332
      %335 = vset.pattern.permute.xlu0 1
      %336 = vperm.xlu0 %335, %v284
      %v337 = vpop.permute.xlu0 %336
      %339 = vset.pattern.permute.xlu0 1
      %340 = vperm.xlu0 %339, %v285
      %v341 = vpop.permute.xlu0 %340
      %v343 = vlaneseq
      %v344 = vshrl.u32 %v343, 7
      %v345 = vsub.s32 0, %v344
      %v346 = vrot.slane %v326, %v345
      %v347 = vmul.f32 %v329, %v346
      %v348 = vmul.f32 %v333, %v346
      %v349 = vmul.f32 %v337, %v346
      %v350 = vmul.f32 %v341, %v346
      %v351 = vadd.f32 %v322, %v347
      %v352 = vadd.f32 %v323, %v348
      %v353 = vadd.f32 %v324, %v349
      %v354 = vadd.f32 %v325, %v350
      %v355 = vtanh.pop %v351
      %v356 = vtanh.pop %v352
      %v357 = vtanh.pop %v353
      %v358 = vtanh.pop %v354
      %v359 = vld [vmem:[%s3] sm:$0xff]
      %v360 = vld [vmem:[%s3 + $0x8] sm:$0xff]
      %v361 = vld [vmem:[%s3 + $0x10] sm:$0xff]
      %v362 = vld [vmem:[%s3 + $0x18] sm:$0xff]
      %v363 = vld [vmem:[%s3 + $0x20] sm:$0xff]
      %v364 = vld [vmem:[%s3 + $0x28] sm:$0xff]
      %v365 = vld [vmem:[%s3 + $0x30] sm:$0xff]
      %v366 = vld [vmem:[%s3 + $0x38] sm:$0xff]
      %v367 = vld [vmem:[%s3 + $0x40] sm:$0xff]
      %v368 = vld [vmem:[%s3 + $0x48] sm:$0xff]
      %v369 = vld [vmem:[%s3 + $0x50] sm:$0xff]
      %v370 = vld [vmem:[%s3 + $0x58] sm:$0xff]
      %v371 = vld [vmem:[%s3 + $0x60] sm:$0xff]
      %v372 = vld [vmem:[%s3 + $0x68] sm:$0xff]
      %v373 = vld [vmem:[%s3 + $0x70] sm:$0xff]
      %v374 = vld [vmem:[%s3 + $0x78] sm:$0xff]
      %v375 = vld [vmem:[%s4] sm:$0x1]
      %v377 = vlaneseq
      %v378 = vshrl.u32 %v377, 7
      %v379 = vsub.s32 0, %v378
      %v380 = vrot.slane %v375, %v379
      %382 = vmatprep.subr.mxu0 0.0
      %383 = vmatpush1.msra.mxu0 %v359
      %384 = vmatprep.subr.mxu0 0.0
      %385 = vmatpush1.msra.mxu0 %v360
      %386 = vmatprep.subr.mxu0 0.0
      %387 = vmatpush1.msra.mxu0 %v361
      %388 = vmatprep.subr.mxu0 0.0
      %389 = vmatpush1.msra.mxu0 %v362
      %390 = vmatprep.subr.mxu0 0.0
      %391 = vmatpush1.msra.mxu0 %v363
      %392 = vmatprep.subr.mxu0 0.0
      %393 = vmatpush1.msra.mxu0 %v364
      %394 = vmatprep.subr.mxu0 0.0
      %395 = vmatpush1.msra.mxu0 %v365
      %396 = vmatprep.subr.mxu0 0.0
      %397 = vmatpush1.msra.mxu0 %v366
      %398 = vmatprep.subr.mxu0 0.0
      %399 = vmatpush1.msra.mxu0 %v367
      %400 = vmatprep.subr.mxu0 0.0
      %401 = vmatpush1.msra.mxu0 %v368
      %402 = vmatprep.subr.mxu0 0.0
      %403 = vmatpush1.msra.mxu0 %v369
      %404 = vmatprep.subr.mxu0 0.0
      %405 = vmatpush1.msra.mxu0 %v370
      %406 = vmatprep.subr.mxu0 0.0
      %407 = vmatpush1.msra.mxu0 %v371
      %408 = vmatprep.subr.mxu0 0.0
      %409 = vmatpush1.msra.mxu0 %v372
      %410 = vmatprep.subr.mxu0 0.0
      %411 = vmatpush1.msra.mxu0 %v373
      %412 = vmatprep.subr.mxu0 0.0
      %413 = vmatpush1.msra.mxu0 %v374
      %414 = vmatprep.subr.mxu0 0.0
      %415 = vmatpush1.msra.mxu0 0.0
      %416 = vmatprep.subr.mxu0 0.0
      %417 = vmatpush1.msra.mxu0 0.0
      %418 = vmatprep.subr.mxu0 0.0
      %419 = vmatpush1.msra.mxu0 0.0
      %420 = vmatprep.subr.mxu0 0.0
      %421 = vmatpush1.msra.mxu0 0.0
      %422 = vmatprep.subr.mxu0 0.0
      %423 = vmatpush1.msra.mxu0 0.0
      %424 = vmatprep.subr.mxu0 0.0
      %425 = vmatpush1.msra.mxu0 0.0
      %426 = vmatprep.subr.mxu0 0.0
      %427 = vmatpush1.msra.mxu0 0.0
      %428 = vmatprep.subr.mxu0 0.0
      %429 = vmatpush1.msra.mxu0 0.0
      %430 = vmatprep.subr.mxu0 0.0
      %431 = vmatpush1.msra.mxu0 0.0
      %432 = vmatprep.subr.mxu0 0.0
      %433 = vmatpush1.msra.mxu0 0.0
      %434 = vmatprep.subr.mxu0 0.0
      %435 = vmatpush1.msra.mxu0 0.0
      %436 = vmatprep.subr.mxu0 0.0
      %437 = vmatpush1.msra.mxu0 0.0
      %438 = vmatprep.subr.mxu0 0.0
      %439 = vmatpush1.msra.mxu0 0.0
      %440 = vmatprep.subr.mxu0 0.0
      %441 = vmatpush1.msra.mxu0 0.0
      %442 = vmatprep.subr.mxu0 0.0
      %443 = vmatpush1.msra.mxu0 0.0
      %444 = vmatprep.subr.mxu0 0.0
      %445 = vmatpush1.msra.mxu0 0.0
      %446 = vmatprep.mubr.f32.mxu0 0.0
      %447 = vmatmul.mubr.f32.gmra.mrb[0].mxu0 %v355
      %v448 = vpop.f32.mrb[0].mxu0
      %v449 = vadd.f32 %v380, %v448
      %v450 = vpop.f32.mrb[0].mxu0
      %451 = vmatprep.mubr.f32.mxu0 0.0
      %452 = vmatmul.mubr.f32.gmra.mrb[0].mxu0 %v356
      %v453 = vpop.f32.mrb[0].mxu0
      %v454 = vadd.f32 %v380, %v453
      %v455 = vpop.f32.mrb[0].mxu0
      %456 = vmatprep.mubr.f32.mxu0 0.0
      %457 = vmatmul.mubr.f32.gmra.mrb[0].mxu0 %v357
      %v458 = vpop.f32.mrb[0].mxu0
      %v459 = vadd.f32 %v380, %v458
      %v460 = vpop.f32.mrb[0].mxu0
      %461 = vmatprep.mubr.f32.mxu0 0.0
      %462 = vmatmul.mubr.f32.gmra.mrb[0].mxu0 %v358
      %v463 = vpop.f32.mrb[0].mxu0
      %v464 = vadd.f32 %v380, %v463
      %v465 = vpop.f32.mrb[0].mxu0
      %466 = vdwg.mxu0
      %v467 = vtanh.pop %v449
      %v468 = vtanh.pop %v454
      %v469 = vtanh.pop %v459
      %v470 = vtanh.pop %v464
      %v471 = vld [vmem:[%s5] sm:$0xff]
      %v472 = vld [vmem:[%s5 + $0x8] sm:$0xff]
      %v473 = vld [vmem:[%s5 + $0x10] sm:$0xff]
      %v474 = vld [vmem:[%s5 + $0x18] sm:$0xff]
      %v475 = vld [vmem:[%s5 + $0x20] sm:$0xff]
      %v476 = vld [vmem:[%s5 + $0x28] sm:$0xff]
      %v477 = vld [vmem:[%s5 + $0x30] sm:$0xff]
      %v478 = vld [vmem:[%s5 + $0x38] sm:$0xff]
      %v479 = vld [vmem:[%s5 + $0x40] sm:$0xff]
      %v480 = vld [vmem:[%s5 + $0x48] sm:$0xff]
      %v481 = vld [vmem:[%s5 + $0x50] sm:$0xff]
      %v482 = vld [vmem:[%s5 + $0x58] sm:$0xff]
      %v483 = vld [vmem:[%s5 + $0x60] sm:$0xff]
      %v484 = vld [vmem:[%s5 + $0x68] sm:$0xff]
      %v485 = vld [vmem:[%s5 + $0x70] sm:$0xff]
      %v486 = vld [vmem:[%s5 + $0x78] sm:$0xff]
      %v487 = vld [vmem:[%s6] sm:$0x1]
      %v489 = vlaneseq
      %v490 = vshrl.u32 %v489, 7
      %v491 = vsub.s32 0, %v490
      %v492 = vrot.slane %v487, %v491
      %494 = vmatprep.subr.mxu0 0.0
      %495 = vmatpush1.msra.mxu0 %v471
      %496 = vmatprep.subr.mxu0 0.0
      %497 = vmatpush1.msra.mxu0 %v472
      %498 = vmatprep.subr.mxu0 0.0
      %499 = vmatpush1.msra.mxu0 %v473
      %500 = vmatprep.subr.mxu0 0.0
      %501 = vmatpush1.msra.mxu0 %v474
      %502 = vmatprep.subr.mxu0 0.0
      %503 = vmatpush1.msra.mxu0 %v475
      %504 = vmatprep.subr.mxu0 0.0
      %505 = vmatpush1.msra.mxu0 %v476
      %506 = vmatprep.subr.mxu0 0.0
      %507 = vmatpush1.msra.mxu0 %v477
      %508 = vmatprep.subr.mxu0 0.0
      %509 = vmatpush1.msra.mxu0 %v478
      %510 = vmatprep.subr.mxu0 0.0
      %511 = vmatpush1.msra.mxu0 %v479
      %512 = vmatprep.subr.mxu0 0.0
      %513 = vmatpush1.msra.mxu0 %v480
      %514 = vmatprep.subr.mxu0 0.0
      %515 = vmatpush1.msra.mxu0 %v481
      %516 = vmatprep.subr.mxu0 0.0
      %517 = vmatpush1.msra.mxu0 %v482
      %518 = vmatprep.subr.mxu0 0.0
      %519 = vmatpush1.msra.mxu0 %v483
      %520 = vmatprep.subr.mxu0 0.0
      %521 = vmatpush1.msra.mxu0 %v484
      %522 = vmatprep.subr.mxu0 0.0
      %523 = vmatpush1.msra.mxu0 %v485
      %524 = vmatprep.subr.mxu0 0.0
      %525 = vmatpush1.msra.mxu0 %v486
      %526 = vmatprep.subr.mxu0 0.0
      %527 = vmatpush1.msra.mxu0 0.0
      %528 = vmatprep.subr.mxu0 0.0
      %529 = vmatpush1.msra.mxu0 0.0
      %530 = vmatprep.subr.mxu0 0.0
      %531 = vmatpush1.msra.mxu0 0.0
      %532 = vmatprep.subr.mxu0 0.0
      %533 = vmatpush1.msra.mxu0 0.0
      %534 = vmatprep.subr.mxu0 0.0
      %535 = vmatpush1.msra.mxu0 0.0
      %536 = vmatprep.subr.mxu0 0.0
      %537 = vmatpush1.msra.mxu0 0.0
      %538 = vmatprep.subr.mxu0 0.0
      %539 = vmatpush1.msra.mxu0 0.0
      %540 = vmatprep.subr.mxu0 0.0
      %541 = vmatpush1.msra.mxu0 0.0
      %542 = vmatprep.subr.mxu0 0.0
      %543 = vmatpush1.msra.mxu0 0.0
      %544 = vmatprep.subr.mxu0 0.0
      %545 = vmatpush1.msra.mxu0 0.0
      %546 = vmatprep.subr.mxu0 0.0
      %547 = vmatpush1.msra.mxu0 0.0
      %548 = vmatprep.subr.mxu0 0.0
      %549 = vmatpush1.msra.mxu0 0.0
      %550 = vmatprep.subr.mxu0 0.0
      %551 = vmatpush1.msra.mxu0 0.0
      %552 = vmatprep.subr.mxu0 0.0
      %553 = vmatpush1.msra.mxu0 0.0
      %554 = vmatprep.subr.mxu0 0.0
      %555 = vmatpush1.msra.mxu0 0.0
      %556 = vmatprep.subr.mxu0 0.0
      %557 = vmatpush1.msra.mxu0 0.0
      %558 = vmatprep.mubr.f32.mxu0 0.0
      %559 = vmatmul.mubr.f32.gmra.mrb[0].mxu0 %v467
      %v560 = vpop.f32.mrb[0].mxu0
      %v561 = vadd.f32 %v492, %v560
      %v562 = vpop.f32.mrb[0].mxu0
      %563 = vmatprep.mubr.f32.mxu0 0.0
      %564 = vmatmul.mubr.f32.gmra.mrb[0].mxu0 %v468
      %v565 = vpop.f32.mrb[0].mxu0
      %v566 = vadd.f32 %v492, %v565
      %v567 = vpop.f32.mrb[0].mxu0
      %568 = vmatprep.mubr.f32.mxu0 0.0
      %569 = vmatmul.mubr.f32.gmra.mrb[0].mxu0 %v469
      %v570 = vpop.f32.mrb[0].mxu0
      %v571 = vadd.f32 %v492, %v570
      %v572 = vpop.f32.mrb[0].mxu0
      %573 = vmatprep.mubr.f32.mxu0 0.0
      %574 = vmatmul.mubr.f32.gmra.mrb[0].mxu0 %v470
      %v575 = vpop.f32.mrb[0].mxu0
      %v576 = vadd.f32 %v492, %v575
      %v577 = vpop.f32.mrb[0].mxu0
      %578 = vdwg.mxu0
      %v579 = vsub.f32 0.0, %v561
      %v580 = vsub.f32 0.0, %v566
      %v581 = vsub.f32 0.0, %v571
      %v582 = vsub.f32 0.0, %v576
      %v583 = vmul.f32 %v579, 1.442695
      %v584 = vpow.pop %v583
      %v585 = vmul.f32 %v580, 1.442695
      %v586 = vpow.pop %v585
      %v587 = vmul.f32 %v581, 1.442695
      %v588 = vpow.pop %v587
      %v589 = vmul.f32 %v582, 1.442695
      %v590 = vpow.pop %v589
      %v591 = vadd.f32 %v584, 1.0
      %v592 = vadd.f32 %v586, 1.0
      %v593 = vadd.f32 %v588, 1.0
      %v594 = vadd.f32 %v590, 1.0
      %v595 = vrcp.pop %v591
      %v596 = vrcp.pop %v592
      %v597 = vrcp.pop %v593
      %v598 = vrcp.pop %v594
      %599 = vrot.lane.b32.xlu0 %v282, 127
      %v600 = vpop.permute.xlu0 %599
      %601 = vrot.lane.b32.xlu0 %v283, 127
      %v602 = vpop.permute.xlu0 %601
      %603 = vrot.lane.b32.xlu0 %v284, 127
      %v604 = vpop.permute.xlu0 %603
      %605 = vrot.lane.b32.xlu0 %v285, 127
      %v606 = vpop.permute.xlu0 %605
      %v611 = vsub.f32 %v282, %v600
      %v612 = vsub.f32 %v283, %v602
      %v613 = vsub.f32 %v284, %v604
      %v614 = vsub.f32 %v285, %v606
      %616 = vset.pattern.permute.xlu0 2
      %617 = vperm.xlu0 %616, %v611
      %v618 = vpop.permute.xlu0 %617
      %621 = vset.pattern.permute.xlu0 2
      %622 = vperm.xlu0 %621, %v612
      %v623 = vpop.permute.xlu0 %622
      %626 = vset.pattern.permute.xlu0 2
      %627 = vperm.xlu0 %626, %v613
      %v628 = vpop.permute.xlu0 %627
      %631 = vset.pattern.permute.xlu0 2
      %632 = vperm.xlu0 %631, %v614
      %v633 = vpop.permute.xlu0 %632
      %v635 = vmul.f32 %v618, %v595
      %v636 = vmul.f32 %v623, %v596
      %v637 = vmul.f32 %v628, %v597
      %v638 = vmul.f32 %v633, %v598
      %639 = vset.pattern.permute.xlu0 3
      %640 = vperm.xlu0 %639, %v282
      %v641 = vpop.permute.xlu0 %640
      %643 = vset.pattern.permute.xlu0 3
      %644 = vperm.xlu0 %643, %v283
      %v645 = vpop.permute.xlu0 %644
      %647 = vset.pattern.permute.xlu0 3
      %648 = vperm.xlu0 %647, %v284
      %v649 = vpop.permute.xlu0 %648
      %651 = vset.pattern.permute.xlu0 3
      %652 = vperm.xlu0 %651, %v285
      %v653 = vpop.permute.xlu0 %652
      %v655 = vadd.f32 %v635, %v641
      %v656 = vadd.f32 %v636, %v645
      %v657 = vadd.f32 %v637, %v649
      %v658 = vadd.f32 %v638, %v653
      %vm659 = vcmask 64512
      %660 = vst.msk [vmem:[%s280] sm:$0xff] %vm659, %v655
      %661 = vst.msk [vmem:[%s280 + $0x8] sm:$0xff] %vm659, %v656
      %662 = vst.msk [vmem:[%s280 + $0x10] sm:$0xff] %vm659, %v657
      %663 = vst.msk [vmem:[%s280 + $0x18] sm:$0xff] %vm659, %v658
      %s664 = smul.u32 4, %s18
      %p665 = scmp.lt.s32.totalorder %s664, 7
      %s666 = scalar_select %p665, %s664, 7
      %s667 = smul.addr %s666, 8
      %s668 = scalar_lea.vmem %s7, %s667
      // Predicated region
      $region49: #{forward.1} parent=47 // pred_check
        %p669 = pneg %p188
      $region50: #{forward.1} parent=47 // pred_check_branch
        %671 = sbr.rel (%p669) target = $region52
      $region51: #{forward.1} parent=47 // pred_region
        %s672 = smul.u32 4, %s18
      $region52: #{forward.1} parent=47 // pred_fallthru
        _
    $region48: #{forward.1} parent=5 // pred_fallthru
      _
    %p673 = scmp.le.s32.totalorder 2, %s13
    // Predicated region
    $region53: #{forward.1} parent=5 // pred_check
      %p674 = pneg %p673
    $region54: #{forward.1} parent=5 // pred_check_branch
      %676 = sbr.rel (%p674) target = $region56
    $region55: #{forward.1} parent=5 // pred_region
      %s677 = ssub.s32 %s13, 2
      // Predicated region
      $region57: #{forward.1} parent=55 // pred_check
        %p678 = pneg %p194
      $region58: #{forward.1} parent=55 // pred_check_branch
        %680 = sbr.rel (%p678) target = $region60
      $region59: #{forward.1} parent=55 // pred_region
        %s681 = smul.u32 4, %s19
        %p682 = scmp.lt.s32.totalorder %s681, 7
        %s683 = scalar_select %p682, %s681, 7
        %s684 = smul.addr %s683, 8
        %s685 = scalar_lea.vmem %s7, %s684
      $region60: #{forward.1} parent=55 // pred_fallthru
        _
    $region56: #{forward.1} parent=5 // pred_fallthru
      _
  $region6: #{forward.1} parent=0 // loop_footer
    %s17 = sadd.s32 1, %s13
  $region7: #{forward.1} parent=0 // loop_footer_branch
    %12 = sbr.rel target = $region3
  $region8: #{forward.1} parent=0 // loop_exit
    _

</llo_original>
